<compile_context>
chip_gen: v7x
topology: tpu7x:2x2x1
jax: 0.10.0
libtpu: 0.0.40
codegen_flags: <defaults>
</compile_context>

<pallas_src>
import functools

import jax
import jax.numpy as jnp
from jax.experimental import pallas as pl
from jax.experimental.pallas import tpu as pltpu


def _textcnn_kernel(x_ref, wc_ref, bc_ref, fcw_ref, fcb_ref, out_ref, *, B, L):
    BL, E = x_ref.shape                    # (B*L, E), f32
    k_taps, _, FT = wc_ref.shape           # (k_taps, E, n_branch*num_filters), bf16
    pad_max = (k_taps - 1) // 2

    x2 = x_ref[...]                        # (B*L, E) f32

    # Row position within each sequence (cheap bit-and when L is a power of 2).
    row = jax.lax.broadcasted_iota(jnp.int32, (BL, 1), 0)
    l_idx = (row & (L - 1)) if (L & (L - 1)) == 0 else (row % L)

    # Per-tap accumulation. A roll that crosses a batch/sequence boundary lands
    # exactly on an out-of-range position, which the mask zeroes (== Conv1d
    # zero padding). Each dot is bf16 x bf16 -> f32 accumulate on the MXU.
    conv = jnp.zeros((BL, FT), jnp.float32)
    for s in range(-pad_max, pad_max + 1):
        slot = s + pad_max
        if s == 0:
            tap = x2
        else:
            rolled = pltpu.roll(x2, (-s) % BL, axis=0)   # rolled[r] = x2[(r+s) % BL]
            valid = (l_idx + s >= 0) & (l_idx + s < L)   # (BL, 1), broadcasts over lanes
            tap = jnp.where(valid, rolled, 0.0)
        conv = conv + jnp.dot(tap.astype(jnp.bfloat16), wc_ref[slot],
                              preferred_element_type=jnp.float32)

    # bias + ReLU on one lane-dense (BL, FT) slab.
    conv = jnp.maximum(conv + bc_ref[...], 0.0)

    # max_pool1d over the full time axis + fc, one batch row at a time, keeping
    # pooled activations in their natural (sublane, lane) layout. Column order
    # already matches torch.cat(pools, 1) ([branch0 | branch1 | ...]).
    acc = fcb_ref[...]                                    # (1, c_pad) f32
    for b in range(B):
        pooled_b = jnp.max(conv[b * L:(b + 1) * L, :], axis=0, keepdims=True)  # (1, FT)
        acc = acc + jnp.dot(pooled_b.astype(jnp.bfloat16), fcw_ref[b],
                            preferred_element_type=jnp.float32)
    # TODO(synk): nn.Dropout is identity at inference (eval mode); the
    # training-time Bernoulli mask is intentionally omitted.
    out_ref[...] = acc


def prepare_params(params, *, filter_sizes, num_filters, num_classes, batch):
    """One-time parameter fusion/padding (hoisted out of the forward path).

    Builds:
      wc  : (k_taps, E, n_branch*F) bf16 — all conv branches fused per tap
            (zero-padded taps for the smaller filters).
      bc  : (1, n_branch*F) f32 fused conv bias.
      fcw : (B, n_branch*F, c_pad) bf16 — fc weight reshaped per batch row,
            class dim padded to 128 lanes (lane-dense output store).
      fcb : (1, c_pad) f32.
    """
    if any(k % 2 == 0 for k in filter_sizes):
        # For even k, PyTorch Conv1d with padding=(k-1)//2 yields length L-1;
        # the shifted-tap formulation assumes odd k.
        raise ValueError("filter_sizes must be odd")

    n_branch = len(filter_sizes)
    F = num_filters
    FT = n_branch * F
    E = params["conv0_w"].shape[1]
    pad_max = (max(filter_sizes) - 1) // 2
    k_taps = 2 * pad_max + 1

    wc = jnp.zeros((k_taps, E, FT), jnp.float32)
    for i, k in enumerate(filter_sizes):
        pad = (k - 1) // 2
        w = params[f"conv{i}_w"]                          # (k, E, F)
        for t in range(k):
            slot = (t - pad) + pad_max
            wc = wc.at[slot, :, i * F:(i + 1) * F].set(w[t])
    bc = jnp.concatenate([params[f"conv{i}_b"] for i in range(n_branch)], axis=1)

    c_pad = ((num_classes + 127) // 128) * 128
    fcw, fcb = params["fc_w"], params["fc_b"]             # (B*FT, C), (1, C)
    fcw_p = jnp.zeros((fcw.shape[0], c_pad), jnp.float32).at[:, :num_classes].set(fcw)
    fcb_p = jnp.zeros((1, c_pad), jnp.float32).at[:, :num_classes].set(fcb)
    fcw3 = fcw_p.reshape(batch, FT, c_pad)

    return {
        "wc": wc.astype(jnp.bfloat16),
        "bc": bc,
        "fcw": fcw3.astype(jnp.bfloat16),
        "fcb": fcb_p,
        "num_classes": num_classes,
        "c_pad": c_pad,
    }


def textcnn_forward(x, prepped):
    B, L, E = x.shape
    c_pad = prepped["c_pad"]
    x2 = x.reshape(B * L, E)

    kernel = functools.partial(_textcnn_kernel, B=B, L=L)
    out = pl.pallas_call(
        kernel,
        out_shape=jax.ShapeDtypeStruct((1, c_pad), jnp.float32),
        # No grid: a single invocation with every (tiny) operand resident in
        # VMEM — no double-buffering, no per-step pipeline overhead.
        in_specs=[pl.BlockSpec(memory_space=pltpu.MemorySpace.VMEM)] * 5,
        out_specs=pl.BlockSpec(memory_space=pltpu.MemorySpace.VMEM),
        # NOTE: for real throughput, add a leading grid axis over independent
        # examples (marked "parallel" to use both v7x TensorCores) and tile the
        # (BL, E) input along rows if B*L ever grows beyond a few hundred rows.
    )(x2, prepped["wc"], prepped["bc"], prepped["fcw"], prepped["fcb"])
    return out[:, :prepped["num_classes"]]


def init_params(key, embedding_dim, num_classes, filter_sizes, num_filters):
    """Deterministic synthetic parameters matching nn.Conv1d / nn.Linear shapes."""
    params = {}
    keys = jax.random.split(key, 2 * len(filter_sizes) + 2)
    for i, k in enumerate(filter_sizes):
        # PyTorch Conv1d weight is (F, E, k); stored here as (k, E, F).
        params[f"conv{i}_w"] = 0.1 * jax.random.normal(
            keys[2 * i], (k, embedding_dim, num_filters), jnp.float32)
        params[f"conv{i}_b"] = 0.1 * jax.random.normal(
            keys[2 * i + 1], (1, num_filters), jnp.float32)
    d_in = len(filter_sizes) * num_filters * 4       # nn.Linear(len(fs)*F*4, C)
    params["fc_w"] = 0.1 * jax.random.normal(keys[-2], (d_in, num_classes), jnp.float32)
    params["fc_b"] = 0.1 * jax.random.normal(keys[-1], (1, num_classes), jnp.float32)
    return params


def textcnn_reference(x, params, *, filter_sizes, num_filters, num_classes):
    """Pure-JAX f32 reference mirroring the PyTorch forward (correctness check)."""
    B, L, E = x.shape
    x_ncl = jnp.transpose(x, (0, 2, 1))              # (B, E, L) like x.transpose(1,2)
    pools = []
    for i, k in enumerate(filter_sizes):
        w = jnp.transpose(params[f"conv{i}_w"], (2, 1, 0))  # (F, E, k)
        b = params[f"conv{i}_b"][0]
        pad = (k - 1) // 2
        y = jax.lax.conv_general_dilated(
            x_ncl, w, window_strides=(1,), padding=[(pad, pad)],
            dimension_numbers=("NCH", "OIH", "NCH"))
        y = jnp.maximum(y + b[None, :, None], 0.0)   # (B, F, L)
        pools.append(jnp.max(y, axis=2))             # (B, F)
    feat = jnp.concatenate(pools, axis=1)            # (B, n_branch*F)
    flat = feat.reshape(1, B * E)                    # view(1, B*embedding_dim)
    return flat @ params["fc_w"] + params["fc_b"]


if __name__ == "__main__":
    embedding_dim = 32
    num_classes = 4
    filter_sizes = (3, 5)
    num_filters = 16          # len(filter_sizes) * num_filters == embedding_dim
    batch = 4                 # required by x.view(1, B*embedding_dim) vs fc in_dim
    seq_len = 16

    key = jax.random.PRNGKey(0)
    kx, kp = jax.random.split(key)
    x = jax.random.normal(kx, (batch, seq_len, embedding_dim), jnp.float32)
    params = init_params(kp, embedding_dim, num_classes, filter_sizes, num_filters)

    # One-time parameter fusion (out of the per-call path).
    prepped = prepare_params(params, filter_sizes=filter_sizes,
                             num_filters=num_filters, num_classes=num_classes,
                             batch=batch)

    logits = textcnn_forward(x, prepped)
    logits = jax.block_until_ready(logits)

    ref = textcnn_reference(x, params, filter_sizes=filter_sizes,
                            num_filters=num_filters, num_classes=num_classes)
    assert logits.shape == (1, num_classes)
    # bf16 matmul operands / f32 accumulation -> looser tolerance than pure f32.
    assert jnp.allclose(logits, ref, atol=5e-2, rtol=5e-2), (logits, ref)
    print("KERNEL_OK")
</pallas_src>

<mosaic_0001>
module attributes {stable_mosaic.version = 11 : i64} {
  func.func @_textcnn_kernel(%arg0: memref<64x32xf32, #tpu.memory_space<vmem>>, %arg1: memref<5x32x32xbf16, #tpu.memory_space<vmem>>, %arg2: memref<1x32xf32, #tpu.memory_space<vmem>>, %arg3: memref<4x32x128xbf16, #tpu.memory_space<vmem>>, %arg4: memref<1x128xf32, #tpu.memory_space<vmem>>, %arg5: memref<1x128xf32, #tpu.memory_space<vmem>>) attributes {dimension_semantics = [], scalar_prefetch = 0 : i64, scratch_operands = 0 : i64, tpu.core_type = #tpu.core_type<tc>} {
    %c0 = arith.constant 0 : index
    %c0_0 = arith.constant 0 : index
    %0 = vector.load %arg0[%c0, %c0_0] : memref<64x32xf32, #tpu.memory_space<vmem>>, vector<64x32xf32>
    %1 = tpu.iota {dimensions = array<i32: 0>} : vector<64x1xi32>
    %c15_i32 = arith.constant 15 : i32
    %2 = vector.broadcast %c15_i32 : i32 to vector<64x1xi32>
    %3 = arith.andi %1, %2 : vector<64x1xi32>
    %cst = arith.constant 0.000000e+00 : f32
    %4 = vector.broadcast %cst : f32 to vector<64x32xf32>
    %c2_i32 = arith.constant 2 : i32
    %5 = tpu.dynamic_rotate %0 by %c2_i32 dim 0 : vector<64x32xf32>, i32 -> vector<64x32xf32>
    %c-2_i32 = arith.constant -2 : i32
    %6 = vector.broadcast %c-2_i32 : i32 to vector<64x1xi32>
    %7 = arith.addi %3, %6 : vector<64x1xi32>
    %c0_i32 = arith.constant 0 : i32
    %8 = vector.broadcast %c0_i32 : i32 to vector<64x1xi32>
    %9 = arith.cmpi sge, %7, %8 : vector<64x1xi32>
    %c-2_i32_1 = arith.constant -2 : i32
    %10 = vector.broadcast %c-2_i32_1 : i32 to vector<64x1xi32>
    %11 = arith.addi %3, %10 : vector<64x1xi32>
    %c16_i32 = arith.constant 16 : i32
    %12 = vector.broadcast %c16_i32 : i32 to vector<64x1xi32>
    %13 = arith.cmpi slt, %11, %12 : vector<64x1xi32>
    %14 = arith.andi %9, %13 : vector<64x1xi1>
    %cst_2 = arith.constant 0.000000e+00 : f32
    %15 = vector.shape_cast %14 : vector<64x1xi1> to vector<64x1xi1>
    %16 = vector.broadcast %15 : vector<64x1xi1> to vector<64x32xi1>
    %17 = vector.broadcast %cst_2 : f32 to vector<64x32xf32>
    %18 = arith.select %16, %5, %17 : vector<64x32xi1>, vector<64x32xf32>
    %19 = arith.truncf %18 : vector<64x32xf32> to vector<64x32xbf16>
    %c0_3 = arith.constant 0 : index
    %c0_4 = arith.constant 0 : index
    %c0_5 = arith.constant 0 : index
    %20 = vector.load %arg1[%c0_3, %c0_4, %c0_5] : memref<5x32x32xbf16, #tpu.memory_space<vmem>>, vector<1x32x32xbf16>
    %21 = vector.shape_cast %20 : vector<1x32x32xbf16> to vector<32x32xbf16>
    %cst_6 = arith.constant dense<0.000000e+00> : vector<64x32xf32>
    %22 = tpu.matmul %19, %21, %cst_6 {dimension_numbers = #tpu.dot_dimension_numbers<[1], [0], [0], [1], [0, 0, 1, 1], [], []>} : vector<64x32xbf16>, vector<32x32xbf16>, vector<64x32xf32> -> vector<64x32xf32>
    %23 = arith.addf %4, %22 : vector<64x32xf32>
    %c1_i32 = arith.constant 1 : i32
    %24 = tpu.dynamic_rotate %0 by %c1_i32 dim 0 : vector<64x32xf32>, i32 -> vector<64x32xf32>
    %c-1_i32 = arith.constant -1 : i32
    %25 = vector.broadcast %c-1_i32 : i32 to vector<64x1xi32>
    %26 = arith.addi %3, %25 : vector<64x1xi32>
    %c0_i32_7 = arith.constant 0 : i32
    %27 = vector.broadcast %c0_i32_7 : i32 to vector<64x1xi32>
    %28 = arith.cmpi sge, %26, %27 : vector<64x1xi32>
    %c-1_i32_8 = arith.constant -1 : i32
    %29 = vector.broadcast %c-1_i32_8 : i32 to vector<64x1xi32>
    %30 = arith.addi %3, %29 : vector<64x1xi32>
    %c16_i32_9 = arith.constant 16 : i32
    %31 = vector.broadcast %c16_i32_9 : i32 to vector<64x1xi32>
    %32 = arith.cmpi slt, %30, %31 : vector<64x1xi32>
    %33 = arith.andi %28, %32 : vector<64x1xi1>
    %cst_10 = arith.constant 0.000000e+00 : f32
    %34 = vector.shape_cast %33 : vector<64x1xi1> to vector<64x1xi1>
    %35 = vector.broadcast %34 : vector<64x1xi1> to vector<64x32xi1>
    %36 = vector.broadcast %cst_10 : f32 to vector<64x32xf32>
    %37 = arith.select %35, %24, %36 : vector<64x32xi1>, vector<64x32xf32>
    %38 = arith.truncf %37 : vector<64x32xf32> to vector<64x32xbf16>
    %c1 = arith.constant 1 : index
    %c0_11 = arith.constant 0 : index
    %c0_12 = arith.constant 0 : index
    %39 = vector.load %arg1[%c1, %c0_11, %c0_12] : memref<5x32x32xbf16, #tpu.memory_space<vmem>>, vector<1x32x32xbf16>
    %40 = vector.shape_cast %39 : vector<1x32x32xbf16> to vector<32x32xbf16>
    %cst_13 = arith.constant dense<0.000000e+00> : vector<64x32xf32>
    %41 = tpu.matmul %38, %40, %cst_13 {dimension_numbers = #tpu.dot_dimension_numbers<[1], [0], [0], [1], [0, 0, 1, 1], [], []>} : vector<64x32xbf16>, vector<32x32xbf16>, vector<64x32xf32> -> vector<64x32xf32>
    %42 = arith.addf %23, %41 : vector<64x32xf32>
    %43 = arith.truncf %0 : vector<64x32xf32> to vector<64x32xbf16>
    %c2 = arith.constant 2 : index
    %c0_14 = arith.constant 0 : index
    %c0_15 = arith.constant 0 : index
    %44 = vector.load %arg1[%c2, %c0_14, %c0_15] : memref<5x32x32xbf16, #tpu.memory_space<vmem>>, vector<1x32x32xbf16>
    %45 = vector.shape_cast %44 : vector<1x32x32xbf16> to vector<32x32xbf16>
    %cst_16 = arith.constant dense<0.000000e+00> : vector<64x32xf32>
    %46 = tpu.matmul %43, %45, %cst_16 {dimension_numbers = #tpu.dot_dimension_numbers<[1], [0], [0], [1], [0, 0, 1, 1], [], []>} : vector<64x32xbf16>, vector<32x32xbf16>, vector<64x32xf32> -> vector<64x32xf32>
    %47 = arith.addf %42, %46 : vector<64x32xf32>
    %c63_i32 = arith.constant 63 : i32
    %48 = tpu.dynamic_rotate %0 by %c63_i32 dim 0 : vector<64x32xf32>, i32 -> vector<64x32xf32>
    %c1_i32_17 = arith.constant 1 : i32
    %49 = vector.broadcast %c1_i32_17 : i32 to vector<64x1xi32>
    %50 = arith.addi %3, %49 : vector<64x1xi32>
    %c0_i32_18 = arith.constant 0 : i32
    %51 = vector.broadcast %c0_i32_18 : i32 to vector<64x1xi32>
    %52 = arith.cmpi sge, %50, %51 : vector<64x1xi32>
    %c1_i32_19 = arith.constant 1 : i32
    %53 = vector.broadcast %c1_i32_19 : i32 to vector<64x1xi32>
    %54 = arith.addi %3, %53 : vector<64x1xi32>
    %c16_i32_20 = arith.constant 16 : i32
    %55 = vector.broadcast %c16_i32_20 : i32 to vector<64x1xi32>
    %56 = arith.cmpi slt, %54, %55 : vector<64x1xi32>
    %57 = arith.andi %52, %56 : vector<64x1xi1>
    %cst_21 = arith.constant 0.000000e+00 : f32
    %58 = vector.shape_cast %57 : vector<64x1xi1> to vector<64x1xi1>
    %59 = vector.broadcast %58 : vector<64x1xi1> to vector<64x32xi1>
    %60 = vector.broadcast %cst_21 : f32 to vector<64x32xf32>
    %61 = arith.select %59, %48, %60 : vector<64x32xi1>, vector<64x32xf32>
    %62 = arith.truncf %61 : vector<64x32xf32> to vector<64x32xbf16>
    %c3 = arith.constant 3 : index
    %c0_22 = arith.constant 0 : index
    %c0_23 = arith.constant 0 : index
    %63 = vector.load %arg1[%c3, %c0_22, %c0_23] : memref<5x32x32xbf16, #tpu.memory_space<vmem>>, vector<1x32x32xbf16>
    %64 = vector.shape_cast %63 : vector<1x32x32xbf16> to vector<32x32xbf16>
    %cst_24 = arith.constant dense<0.000000e+00> : vector<64x32xf32>
    %65 = tpu.matmul %62, %64, %cst_24 {dimension_numbers = #tpu.dot_dimension_numbers<[1], [0], [0], [1], [0, 0, 1, 1], [], []>} : vector<64x32xbf16>, vector<32x32xbf16>, vector<64x32xf32> -> vector<64x32xf32>
    %66 = arith.addf %47, %65 : vector<64x32xf32>
    %c62_i32 = arith.constant 62 : i32
    %67 = tpu.dynamic_rotate %0 by %c62_i32 dim 0 : vector<64x32xf32>, i32 -> vector<64x32xf32>
    %c2_i32_25 = arith.constant 2 : i32
    %68 = vector.broadcast %c2_i32_25 : i32 to vector<64x1xi32>
    %69 = arith.addi %3, %68 : vector<64x1xi32>
    %c0_i32_26 = arith.constant 0 : i32
    %70 = vector.broadcast %c0_i32_26 : i32 to vector<64x1xi32>
    %71 = arith.cmpi sge, %69, %70 : vector<64x1xi32>
    %c2_i32_27 = arith.constant 2 : i32
    %72 = vector.broadcast %c2_i32_27 : i32 to vector<64x1xi32>
    %73 = arith.addi %3, %72 : vector<64x1xi32>
    %c16_i32_28 = arith.constant 16 : i32
    %74 = vector.broadcast %c16_i32_28 : i32 to vector<64x1xi32>
    %75 = arith.cmpi slt, %73, %74 : vector<64x1xi32>
    %76 = arith.andi %71, %75 : vector<64x1xi1>
    %cst_29 = arith.constant 0.000000e+00 : f32
    %77 = vector.shape_cast %76 : vector<64x1xi1> to vector<64x1xi1>
    %78 = vector.broadcast %77 : vector<64x1xi1> to vector<64x32xi1>
    %79 = vector.broadcast %cst_29 : f32 to vector<64x32xf32>
    %80 = arith.select %78, %67, %79 : vector<64x32xi1>, vector<64x32xf32>
    %81 = arith.truncf %80 : vector<64x32xf32> to vector<64x32xbf16>
    %c4 = arith.constant 4 : index
    %c0_30 = arith.constant 0 : index
    %c0_31 = arith.constant 0 : index
    %82 = vector.load %arg1[%c4, %c0_30, %c0_31] : memref<5x32x32xbf16, #tpu.memory_space<vmem>>, vector<1x32x32xbf16>
    %83 = vector.shape_cast %82 : vector<1x32x32xbf16> to vector<32x32xbf16>
    %cst_32 = arith.constant dense<0.000000e+00> : vector<64x32xf32>
    %84 = tpu.matmul %81, %83, %cst_32 {dimension_numbers = #tpu.dot_dimension_numbers<[1], [0], [0], [1], [0, 0, 1, 1], [], []>} : vector<64x32xbf16>, vector<32x32xbf16>, vector<64x32xf32> -> vector<64x32xf32>
    %85 = arith.addf %66, %84 : vector<64x32xf32>
    %c0_33 = arith.constant 0 : index
    %c0_34 = arith.constant 0 : index
    %86 = vector.load %arg2[%c0_33, %c0_34] : memref<1x32xf32, #tpu.memory_space<vmem>>, vector<1x32xf32>
    %87 = vector.broadcast %86 : vector<1x32xf32> to vector<64x32xf32>
    %88 = arith.addf %85, %87 : vector<64x32xf32>
    %cst_35 = arith.constant 0.000000e+00 : f32
    %89 = vector.broadcast %cst_35 : f32 to vector<64x32xf32>
    %90 = arith.maximumf %88, %89 : vector<64x32xf32>
    %c0_36 = arith.constant 0 : index
    %c0_37 = arith.constant 0 : index
    %91 = vector.load %arg4[%c0_36, %c0_37] : memref<1x128xf32, #tpu.memory_space<vmem>>, vector<1x128xf32>
    %92 = vector.extract_strided_slice %90 {offsets = [0, 0], sizes = [16, 32], strides = [1, 1]} : vector<64x32xf32> to vector<16x32xf32>
    %cst_38 = arith.constant dense<0xFF800000> : vector<32xf32>
    %93 = vector.multi_reduction <maximumf>, %92, %cst_38 [0] : vector<16x32xf32> to vector<32xf32>
    %94 = vector.shape_cast %93 : vector<32xf32> to vector<1x32xf32>
    %95 = arith.truncf %94 : vector<1x32xf32> to vector<1x32xbf16>
    %c0_39 = arith.constant 0 : index
    %c0_40 = arith.constant 0 : index
    %c0_41 = arith.constant 0 : index
    %96 = vector.load %arg3[%c0_39, %c0_40, %c0_41] : memref<4x32x128xbf16, #tpu.memory_space<vmem>>, vector<1x32x128xbf16>
    %97 = vector.shape_cast %96 : vector<1x32x128xbf16> to vector<32x128xbf16>
    %cst_42 = arith.constant dense<0.000000e+00> : vector<1x128xf32>
    %98 = tpu.matmul %95, %97, %cst_42 {dimension_numbers = #tpu.dot_dimension_numbers<[1], [0], [0], [1], [0, 0, 1, 1], [], []>} : vector<1x32xbf16>, vector<32x128xbf16>, vector<1x128xf32> -> vector<1x128xf32>
    %99 = arith.addf %91, %98 : vector<1x128xf32>
    %100 = vector.extract_strided_slice %90 {offsets = [16, 0], sizes = [16, 32], strides = [1, 1]} : vector<64x32xf32> to vector<16x32xf32>
    %cst_43 = arith.constant dense<0xFF800000> : vector<32xf32>
    %101 = vector.multi_reduction <maximumf>, %100, %cst_43 [0] : vector<16x32xf32> to vector<32xf32>
    %102 = vector.shape_cast %101 : vector<32xf32> to vector<1x32xf32>
    %103 = arith.truncf %102 : vector<1x32xf32> to vector<1x32xbf16>
    %c1_44 = arith.constant 1 : index
    %c0_45 = arith.constant 0 : index
    %c0_46 = arith.constant 0 : index
    %104 = vector.load %arg3[%c1_44, %c0_45, %c0_46] : memref<4x32x128xbf16, #tpu.memory_space<vmem>>, vector<1x32x128xbf16>
    %105 = vector.shape_cast %104 : vector<1x32x128xbf16> to vector<32x128xbf16>
    %cst_47 = arith.constant dense<0.000000e+00> : vector<1x128xf32>
    %106 = tpu.matmul %103, %105, %cst_47 {dimension_numbers = #tpu.dot_dimension_numbers<[1], [0], [0], [1], [0, 0, 1, 1], [], []>} : vector<1x32xbf16>, vector<32x128xbf16>, vector<1x128xf32> -> vector<1x128xf32>
    %107 = arith.addf %99, %106 : vector<1x128xf32>
    %108 = vector.extract_strided_slice %90 {offsets = [32, 0], sizes = [16, 32], strides = [1, 1]} : vector<64x32xf32> to vector<16x32xf32>
    %cst_48 = arith.constant dense<0xFF800000> : vector<32xf32>
    %109 = vector.multi_reduction <maximumf>, %108, %cst_48 [0] : vector<16x32xf32> to vector<32xf32>
    %110 = vector.shape_cast %109 : vector<32xf32> to vector<1x32xf32>
    %111 = arith.truncf %110 : vector<1x32xf32> to vector<1x32xbf16>
    %c2_49 = arith.constant 2 : index
    %c0_50 = arith.constant 0 : index
    %c0_51 = arith.constant 0 : index
    %112 = vector.load %arg3[%c2_49, %c0_50, %c0_51] : memref<4x32x128xbf16, #tpu.memory_space<vmem>>, vector<1x32x128xbf16>
    %113 = vector.shape_cast %112 : vector<1x32x128xbf16> to vector<32x128xbf16>
    %cst_52 = arith.constant dense<0.000000e+00> : vector<1x128xf32>
    %114 = tpu.matmul %111, %113, %cst_52 {dimension_numbers = #tpu.dot_dimension_numbers<[1], [0], [0], [1], [0, 0, 1, 1], [], []>} : vector<1x32xbf16>, vector<32x128xbf16>, vector<1x128xf32> -> vector<1x128xf32>
    %115 = arith.addf %107, %114 : vector<1x128xf32>
    %116 = vector.extract_strided_slice %90 {offsets = [48, 0], sizes = [16, 32], strides = [1, 1]} : vector<64x32xf32> to vector<16x32xf32>
    %cst_53 = arith.constant dense<0xFF800000> : vector<32xf32>
    %117 = vector.multi_reduction <maximumf>, %116, %cst_53 [0] : vector<16x32xf32> to vector<32xf32>
    %118 = vector.shape_cast %117 : vector<32xf32> to vector<1x32xf32>
    %119 = arith.truncf %118 : vector<1x32xf32> to vector<1x32xbf16>
    %c3_54 = arith.constant 3 : index
    %c0_55 = arith.constant 0 : index
    %c0_56 = arith.constant 0 : index
    %120 = vector.load %arg3[%c3_54, %c0_55, %c0_56] : memref<4x32x128xbf16, #tpu.memory_space<vmem>>, vector<1x32x128xbf16>
    %121 = vector.shape_cast %120 : vector<1x32x128xbf16> to vector<32x128xbf16>
    %cst_57 = arith.constant dense<0.000000e+00> : vector<1x128xf32>
    %122 = tpu.matmul %119, %121, %cst_57 {dimension_numbers = #tpu.dot_dimension_numbers<[1], [0], [0], [1], [0, 0, 1, 1], [], []>} : vector<1x32xbf16>, vector<32x128xbf16>, vector<1x128xf32> -> vector<1x128xf32>
    %123 = arith.addf %115, %122 : vector<1x128xf32>
    %c0_58 = arith.constant 0 : index
    %c0_59 = arith.constant 0 : index
    %124 = vector.load %arg5[%c0_58, %c0_59] : memref<1x128xf32, #tpu.memory_space<vmem>>, vector<1x128xf32>
    tpu.vector_store %arg5[%c0_58, %c0_59], %123 {strides = array<i32>} : memref<1x128xf32, #tpu.memory_space<vmem>>, vector<1x128xf32>,
    return
  }
}

</mosaic_0001>

<llo_original>
// kernel: tpu_custom_call.1
$region0: #{tpu_custom_call.1}
  #allocation0 [shape = 'u32[]', space=smem, size = 0x4, offset = 0x4, fixed_abs, tag = 'smem constant byte address 0x4 - core index']
  #allocation1 [shape = 'u32[144,128]{1,0:T(1,128)}', space=vmem, size = 0x12000, scoped, tag = 'internal scratch']
  %s0 = inlined_call_operand.vmem [shape: f32[64,32], index: 0, kind: input, shape index: {}]
  %s1 = inlined_call_operand.vmem [shape: bf16[5,32,32], index: 1, kind: input, shape index: {}]
  %s2 = inlined_call_operand.vmem [shape: f32[1,32], index: 2, kind: input, shape index: {}]
  %s3 = inlined_call_operand.hbm [shape: bf16[4,32,128], index: 3, kind: input, shape index: {}]
  %s4 = inlined_call_operand.vmem [shape: f32[1,128], index: 4, kind: input, shape index: {}]
  %s5 = inlined_call_operand.hbm [shape: f32[1,128], index: 5, kind: output, shape index: {}]
  %s6 = sld [smem:[#allocation0]]
  $region34: #{tpu_custom_call.1} parent=0
    _
  %s8 = ssub.s32 1, %s6
  %s9 = scalar_select 0, %s8, %s6
  $region1: #{tpu_custom_call.1} parent=0
    #allocation2 [shape = 'u8[32768]{0}', space=vmem, size = 0x8000, scoped, tag = 'input window, operand 3, single buffered']
    #allocation3 [shape = 's32[1]{0}', space=sflag, size = 0x4, scoped, tag = 'scoped memory for tpu_custom_call.1']
    #allocation4 [shape = 's32[1]{0}', space=sflag, size = 0x4, scoped, tag = 'scoped memory for tpu_custom_call.1']
    #allocation5 [shape = 'u8[512]{0}', space=vmem, size = 0x400, scoped, tag = 'output window, operand 0, single buffered']
    %10 = vsyncpa [#allocation3], 0
    %11 = vsyncpa [#allocation4], 0
    // Predicated region
    $region2: #{tpu_custom_call.1} parent=1 // pred_check
      _
    $region3: #{tpu_custom_call.1} parent=1 // pred_check_branch
      %13 = sbr.rel (0) target = $region5
    $region4: #{tpu_custom_call.1} parent=1 // pred_region
      _
    $region5: #{tpu_custom_call.1} parent=1 // pred_fallthru
      _
    // Predicated region
    $region6: #{tpu_custom_call.1} parent=1 // pred_check
      _
    $region7: #{tpu_custom_call.1} parent=1 // pred_check_branch
      %15 = sbr.rel (0) target = $region9
    $region8: #{tpu_custom_call.1} parent=1 // pred_region
      _
    $region9: #{tpu_custom_call.1} parent=1 // pred_fallthru
      _
    // Predicated region
    $region10: #{tpu_custom_call.1} parent=1 // pred_check
      _
    $region11: #{tpu_custom_call.1} parent=1 // pred_check_branch
      %17 = sbr.rel (0) target = $region13
    $region12: #{tpu_custom_call.1} parent=1 // pred_region
      _
    $region13: #{tpu_custom_call.1} parent=1 // pred_fallthru
      _
    // Predicated region
    $region14: #{tpu_custom_call.1} parent=1 // pred_check
      _
    $region15: #{tpu_custom_call.1} parent=1 // pred_check_branch
      %19 = sbr.rel (0) target = $region17
    $region16: #{tpu_custom_call.1} parent=1 // pred_region
      %s21 = ssub.s32 1024, 1024
      %22 = vsyncadd [#allocation3], %s21
      %s23 = sshll.u32 [#allocation2], 4
      %s24 = int_to_ptr.vmem [resolvable:$true] %s23
      %29 = dma.hbm_to_vmem [thread:$0]  %s3, 1024, %s24, [#allocation3], 64, 64, 4
    $region17: #{tpu_custom_call.1} parent=1 // pred_fallthru
      _
    // Predicated region
    $region18: #{tpu_custom_call.1} parent=1 // pred_check
      _
    $region19: #{tpu_custom_call.1} parent=1 // pred_check_branch
      %31 = sbr.rel (0) target = $region21
    $region20: #{tpu_custom_call.1} parent=1 // pred_region
      _
    $region21: #{tpu_custom_call.1} parent=1 // pred_fallthru
      _
    // Predicated region
    $region22: #{tpu_custom_call.1} parent=1 // pred_check
      _
    $region23: #{tpu_custom_call.1} parent=1 // pred_check_branch
      %33 = sbr.rel (0) target = $region25
    $region24: #{tpu_custom_call.1} parent=1 // pred_region
      %34 = dma.done [#allocation3], 1024
    $region25: #{tpu_custom_call.1} parent=1 // pred_fallthru
      _
    %v36 = vld [vmem:[%s0] sm:$0xff]
    %v37 = vld [vmem:[%s0 + $0x8] sm:$0xff]
    %v38 = vld [vmem:[%s0 + $0x10] sm:$0xff]
    %v39 = vld [vmem:[%s0 + $0x18] sm:$0xff]
    %v40 = vld [vmem:[%s0 + $0x20] sm:$0xff]
    %v41 = vld [vmem:[%s0 + $0x28] sm:$0xff]
    %v42 = vld [vmem:[%s0 + $0x30] sm:$0xff]
    %v43 = vld [vmem:[%s0 + $0x38] sm:$0xff]
    %v44 = vlaneseq
    %v45 = vshrl.u32 %v44, 7
    %v46 = vadd.s32 %v45, 8
    %v47 = vadd.s32 %v45, 16
    %v48 = vadd.s32 %v45, 24
    %v49 = vadd.s32 %v45, 32
    %v50 = vadd.s32 %v45, 40
    %v51 = vadd.s32 %v45, 48
    %v52 = vadd.s32 %v45, 56
    %v53 = vand.u32 %v45, 15
    %v54 = vand.u32 %v46, 15
    %v55 = vand.u32 %v47, 15
    %v56 = vand.u32 %v48, 15
    %v57 = vand.u32 %v49, 15
    %v58 = vand.u32 %v50, 15
    %v59 = vand.u32 %v51, 15
    %v60 = vand.u32 %v52, 15
    %v61 = vrot.slane %v36, 6
    %v62 = vrot.slane %v37, 6
    %v63 = vrot.slane %v38, 6
    %v64 = vrot.slane %v39, 6
    %v65 = vrot.slane %v40, 6
    %v66 = vrot.slane %v41, 6
    %v67 = vrot.slane %v42, 6
    %v68 = vrot.slane %v43, 6
    %vm69 = vcmp.lt.s32.totalorder %v45, 2
    %v70 = vsel %vm69, %v67, %v68
    %v71 = vsel %vm69, %v66, %v67
    %v72 = vsel %vm69, %v65, %v66
    %v73 = vsel %vm69, %v64, %v65
    %v74 = vsel %vm69, %v63, %v64
    %v75 = vsel %vm69, %v62, %v63
    %v76 = vsel %vm69, %v61, %v62
    %v77 = vsel %vm69, %v68, %v61
    %v78 = vadd.s32 %v53, 4294967294
    %v79 = vadd.s32 %v54, 4294967294
    %v80 = vadd.s32 %v55, 4294967294
    %v81 = vadd.s32 %v56, 4294967294
    %v82 = vadd.s32 %v57, 4294967294
    %v83 = vadd.s32 %v58, 4294967294
    %v84 = vadd.s32 %v59, 4294967294
    %v85 = vadd.s32 %v60, 4294967294
    %vm86 = vcmp.ge.s32.totalorder %v78, 0
    %vm87 = vcmp.ge.s32.totalorder %v79, 0
    %vm88 = vcmp.ge.s32.totalorder %v80, 0
    %vm89 = vcmp.ge.s32.totalorder %v81, 0
    %vm90 = vcmp.ge.s32.totalorder %v82, 0
    %vm91 = vcmp.ge.s32.totalorder %v83, 0
    %vm92 = vcmp.ge.s32.totalorder %v84, 0
    %vm93 = vcmp.ge.s32.totalorder %v85, 0
    %vm94 = vcmp.lt.s32.totalorder %v78, 16
    %vm95 = vcmp.lt.s32.totalorder %v79, 16
    %vm96 = vcmp.lt.s32.totalorder %v80, 16
    %vm97 = vcmp.lt.s32.totalorder %v81, 16
    %vm98 = vcmp.lt.s32.totalorder %v82, 16
    %vm99 = vcmp.lt.s32.totalorder %v83, 16
    %vm100 = vcmp.lt.s32.totalorder %v84, 16
    %vm101 = vcmp.lt.s32.totalorder %v85, 16
    %vm102 = vmand %vm86, %vm94
    %vm103 = vmand %vm87, %vm95
    %vm104 = vmand %vm88, %vm96
    %vm105 = vmand %vm89, %vm97
    %vm106 = vmand %vm90, %vm98
    %vm107 = vmand %vm91, %vm99
    %vm108 = vmand %vm92, %vm100
    %vm109 = vmand %vm93, %vm101
    %v110 = vsel %vm102, 1, 0
    %v111 = vsel %vm103, 1, 0
    %v112 = vsel %vm104, 1, 0
    %v113 = vsel %vm105, 1, 0
    %v114 = vsel %vm106, 1, 0
    %v115 = vsel %vm107, 1, 0
    %v116 = vsel %vm108, 1, 0
    %v117 = vsel %vm109, 1, 0
    %vm118 = vcmp.eq.s32.totalorder %v110, 1
    %vm119 = vcmp.eq.s32.totalorder %v111, 1
    %vm120 = vcmp.eq.s32.totalorder %v112, 1
    %vm121 = vcmp.eq.s32.totalorder %v113, 1
    %vm122 = vcmp.eq.s32.totalorder %v114, 1
    %vm123 = vcmp.eq.s32.totalorder %v115, 1
    %vm124 = vcmp.eq.s32.totalorder %v116, 1
    %vm125 = vcmp.eq.s32.totalorder %v117, 1
    %v126 = vsel %vm118, %v77, 0.0
    %v127 = vsel %vm119, %v76, 0.0
    %v128 = vsel %vm120, %v75, 0.0
    %v129 = vsel %vm121, %v74, 0.0
    %v130 = vsel %vm122, %v73, 0.0
    %v131 = vsel %vm123, %v72, 0.0
    %v132 = vsel %vm124, %v71, 0.0
    %v133 = vsel %vm125, %v70, 0.0
    %v134 = vpack.c.bf16 %v127, %v126
    %v135 = vpack.c.bf16 %v129, %v128
    %v136 = vpack.c.bf16 %v131, %v130
    %v137 = vpack.c.bf16 %v133, %v132
    %v138 = vld [vmem:[%s1] sm:$0xf]
    %v139 = vld [vmem:[%s1 + $0x4] sm:$0xf]
    %v140 = vld [vmem:[%s1 + $0x8] sm:$0xf]
    %v141 = vld [vmem:[%s1 + $0xc] sm:$0xf]
    %v142 = vrot.slane %v36, 7
    %v143 = vrot.slane %v37, 7
    %v144 = vrot.slane %v38, 7
    %v145 = vrot.slane %v39, 7
    %v146 = vrot.slane %v40, 7
    %v147 = vrot.slane %v41, 7
    %v148 = vrot.slane %v42, 7
    %v149 = vrot.slane %v43, 7
    %vm150 = vcmp.lt.s32.totalorder %v45, 1
    %v151 = vsel %vm150, %v148, %v149
    %v152 = vsel %vm150, %v147, %v148
    %v153 = vsel %vm150, %v146, %v147
    %v154 = vsel %vm150, %v145, %v146
    %v155 = vsel %vm150, %v144, %v145
    %v156 = vsel %vm150, %v143, %v144
    %v157 = vsel %vm150, %v142, %v143
    %v158 = vsel %vm150, %v149, %v142
    %v159 = vadd.s32 %v53, 4294967295
    %v160 = vadd.s32 %v54, 4294967295
    %v161 = vadd.s32 %v55, 4294967295
    %v162 = vadd.s32 %v56, 4294967295
    %v163 = vadd.s32 %v57, 4294967295
    %v164 = vadd.s32 %v58, 4294967295
    %v165 = vadd.s32 %v59, 4294967295
    %v166 = vadd.s32 %v60, 4294967295
    %vm167 = vcmp.ge.s32.totalorder %v159, 0
    %vm168 = vcmp.ge.s32.totalorder %v160, 0
    %vm169 = vcmp.ge.s32.totalorder %v161, 0
    %vm170 = vcmp.ge.s32.totalorder %v162, 0
    %vm171 = vcmp.ge.s32.totalorder %v163, 0
    %vm172 = vcmp.ge.s32.totalorder %v164, 0
    %vm173 = vcmp.ge.s32.totalorder %v165, 0
    %vm174 = vcmp.ge.s32.totalorder %v166, 0
    %vm175 = vcmp.lt.s32.totalorder %v159, 16
    %vm176 = vcmp.lt.s32.totalorder %v160, 16
    %vm177 = vcmp.lt.s32.totalorder %v161, 16
    %vm178 = vcmp.lt.s32.totalorder %v162, 16
    %vm179 = vcmp.lt.s32.totalorder %v163, 16
    %vm180 = vcmp.lt.s32.totalorder %v164, 16
    %vm181 = vcmp.lt.s32.totalorder %v165, 16
    %vm182 = vcmp.lt.s32.totalorder %v166, 16
    %vm183 = vmand %vm167, %vm175
    %vm184 = vmand %vm168, %vm176
    %vm185 = vmand %vm169, %vm177
    %vm186 = vmand %vm170, %vm178
    %vm187 = vmand %vm171, %vm179
    %vm188 = vmand %vm172, %vm180
    %vm189 = vmand %vm173, %vm181
    %vm190 = vmand %vm174, %vm182
    %v191 = vsel %vm183, 1, 0
    %v192 = vsel %vm184, 1, 0
    %v193 = vsel %vm185, 1, 0
    %v194 = vsel %vm186, 1, 0
    %v195 = vsel %vm187, 1, 0
    %v196 = vsel %vm188, 1, 0
    %v197 = vsel %vm189, 1, 0
    %v198 = vsel %vm190, 1, 0
    %vm199 = vcmp.eq.s32.totalorder %v191, 1
    %vm200 = vcmp.eq.s32.totalorder %v192, 1
    %vm201 = vcmp.eq.s32.totalorder %v193, 1
    %vm202 = vcmp.eq.s32.totalorder %v194, 1
    %vm203 = vcmp.eq.s32.totalorder %v195, 1
    %vm204 = vcmp.eq.s32.totalorder %v196, 1
    %vm205 = vcmp.eq.s32.totalorder %v197, 1
    %vm206 = vcmp.eq.s32.totalorder %v198, 1
    %v207 = vsel %vm199, %v158, 0.0
    %v208 = vsel %vm200, %v157, 0.0
    %v209 = vsel %vm201, %v156, 0.0
    %v210 = vsel %vm202, %v155, 0.0
    %v211 = vsel %vm203, %v154, 0.0
    %v212 = vsel %vm204, %v153, 0.0
    %v213 = vsel %vm205, %v152, 0.0
    %v214 = vsel %vm206, %v151, 0.0
    %v215 = vpack.c.bf16 %v208, %v207
    %v216 = vpack.c.bf16 %v210, %v209
    %v217 = vpack.c.bf16 %v212, %v211
    %v218 = vpack.c.bf16 %v214, %v213
    %s219 = scalar_lea.vmem %s1, 16
    %v220 = vld [vmem:[%s219] sm:$0xf]
    %v221 = vld [vmem:[%s219 + $0x4] sm:$0xf]
    %v222 = vld [vmem:[%s219 + $0x8] sm:$0xf]
    %v223 = vld [vmem:[%s219 + $0xc] sm:$0xf]
    %v228 = vunpack.c.l.b16 %v220
    %v229 = vunpack.c.l.b16 %v221
    %v230 = vunpack.c.l.b16 %v222
    %v231 = vunpack.c.l.b16 %v223
    %v232 = vpack.c.b16 %v229, %v228
    %v233 = vpack.c.b16 %v231, %v230
    %vm236 = vcmask 261120
    %v238 = vsel %vm236, %v215, 0
    %v241 = vsel %vm236, %v216, 0
    %v244 = vsel %vm236, %v217, 0
    %v247 = vsel %vm236, %v218, 0
    %249 = vmatprep.subr.bf16.mxu0 0
    %250 = vmatpush1.bf16.msra.mxu0 %v232
    %251 = vmatprep.subr.bf16.mxu0 0
    %252 = vmatpush1.bf16.msra.mxu0 %v233
    %253 = vmatprep.subr.bf16.mxu0 0
    %254 = vmatpush1.bf16.msra.mxu0 0
    %255 = vmatprep.subr.bf16.mxu0 0
    %256 = vmatpush1.bf16.msra.mxu0 0
    %257 = vmatprep.subr.bf16.mxu0 0
    %258 = vmatpush1.bf16.msra.mxu0 0
    %259 = vmatprep.subr.bf16.mxu0 0
    %260 = vmatpush1.bf16.msra.mxu0 0
    %261 = vmatprep.subr.bf16.mxu0 0
    %262 = vmatpush1.bf16.msra.mxu0 0
    %263 = vmatprep.subr.bf16.mxu0 0
    %264 = vmatpush1.bf16.msra.mxu0 0
    %265 = vmatprep.subr.bf16.mxu0 0
    %266 = vmatpush1.bf16.msra.mxu0 0
    %267 = vmatprep.subr.bf16.mxu0 0
    %268 = vmatpush1.bf16.msra.mxu0 0
    %269 = vmatprep.subr.bf16.mxu0 0
    %270 = vmatpush1.bf16.msra.mxu0 0
    %271 = vmatprep.subr.bf16.mxu0 0
    %272 = vmatpush1.bf16.msra.mxu0 0
    %273 = vmatprep.subr.bf16.mxu0 0
    %274 = vmatpush1.bf16.msra.mxu0 0
    %275 = vmatprep.subr.bf16.mxu0 0
    %276 = vmatpush1.bf16.msra.mxu0 0
    %277 = vmatprep.subr.bf16.mxu0 0
    %278 = vmatpush1.bf16.msra.mxu0 0
    %279 = vmatprep.subr.bf16.mxu0 0
    %280 = vmatpush1.bf16.msra.mxu0 0
    %281 = vmatprep.mubr.bf16.mxu0 0
    %282 = vmatmul.mubr.bf16.gmra.mrb[0].mxu0 %v238
    %v283 = vpop.f32.mrb[0].mxu0
    %v284 = vadd.f32 0.0, %v283
    %v285 = vpop.f32.mrb[0].mxu0
    %v286 = vpop.f32.mrb[0].mxu0
    %v287 = vadd.f32 0.0, %v286
    %v288 = vpop.f32.mrb[0].mxu0
    %289 = vmatprep.mubr.bf16.mxu0 0
    %290 = vmatmul.mubr.bf16.gmra.mrb[0].mxu0 %v241
    %v291 = vpop.f32.mrb[0].mxu0
    %v292 = vadd.f32 0.0, %v291
    %v293 = vpop.f32.mrb[0].mxu0
    %v294 = vpop.f32.mrb[0].mxu0
    %v295 = vadd.f32 0.0, %v294
    %v296 = vpop.f32.mrb[0].mxu0
    %297 = vmatprep.mubr.bf16.mxu0 0
    %298 = vmatmul.mubr.bf16.gmra.mrb[0].mxu0 %v244
    %v299 = vpop.f32.mrb[0].mxu0
    %v300 = vadd.f32 0.0, %v299
    %v301 = vpop.f32.mrb[0].mxu0
    %v302 = vpop.f32.mrb[0].mxu0
    %v303 = vadd.f32 0.0, %v302
    %v304 = vpop.f32.mrb[0].mxu0
    %305 = vmatprep.mubr.bf16.mxu0 0
    %306 = vmatmul.mubr.bf16.gmra.mrb[0].mxu0 %v247
    %v307 = vpop.f32.mrb[0].mxu0
    %v308 = vadd.f32 0.0, %v307
    %v309 = vpop.f32.mrb[0].mxu0
    %v310 = vpop.f32.mrb[0].mxu0
    %v311 = vadd.f32 0.0, %v310
    %v312 = vpop.f32.mrb[0].mxu0
    %313 = vdwg.mxu0
    %v318 = vunpack.c.l.b16 %v138
    %v319 = vunpack.c.l.b16 %v139
    %v320 = vunpack.c.l.b16 %v140
    %v321 = vunpack.c.l.b16 %v141
    %v322 = vpack.c.b16 %v319, %v318
    %v323 = vpack.c.b16 %v321, %v320
    %v327 = vsel %vm236, %v134, 0
    %v330 = vsel %vm236, %v135, 0
    %v333 = vsel %vm236, %v136, 0
    %v336 = vsel %vm236, %v137, 0
    %338 = vmatprep.subr.bf16.mxu0 0
    %339 = vmatpush1.bf16.msra.mxu0 %v322
    %340 = vmatprep.subr.bf16.mxu0 0
    %341 = vmatpush1.bf16.msra.mxu0 %v323
    %342 = vmatprep.subr.bf16.mxu0 0
    %343 = vmatpush1.bf16.msra.mxu0 0
    %344 = vmatprep.subr.bf16.mxu0 0
    %345 = vmatpush1.bf16.msra.mxu0 0
    %346 = vmatprep.subr.bf16.mxu0 0
    %347 = vmatpush1.bf16.msra.mxu0 0
    %348 = vmatprep.subr.bf16.mxu0 0
    %349 = vmatpush1.bf16.msra.mxu0 0
    %350 = vmatprep.subr.bf16.mxu0 0
    %351 = vmatpush1.bf16.msra.mxu0 0
    %352 = vmatprep.subr.bf16.mxu0 0
    %353 = vmatpush1.bf16.msra.mxu0 0
    %354 = vmatprep.subr.bf16.mxu0 0
    %355 = vmatpush1.bf16.msra.mxu0 0
    %356 = vmatprep.subr.bf16.mxu0 0
    %357 = vmatpush1.bf16.msra.mxu0 0
    %358 = vmatprep.subr.bf16.mxu0 0
    %359 = vmatpush1.bf16.msra.mxu0 0
    %360 = vmatprep.subr.bf16.mxu0 0
    %361 = vmatpush1.bf16.msra.mxu0 0
    %362 = vmatprep.subr.bf16.mxu0 0
    %363 = vmatpush1.bf16.msra.mxu0 0
    %364 = vmatprep.subr.bf16.mxu0 0
    %365 = vmatpush1.bf16.msra.mxu0 0
    %366 = vmatprep.subr.bf16.mxu0 0
    %367 = vmatpush1.bf16.msra.mxu0 0
    %368 = vmatprep.subr.bf16.mxu0 0
    %369 = vmatpush1.bf16.msra.mxu0 0
    %370 = vmatprep.mubr.bf16.mxu0 0
    %371 = vmatmul.mubr.bf16.gmra.mrb[0].mxu0 %v327
    %v372 = vpop.f32.mrb[0].mxu0
    %v373 = vadd.f32 %v284, %v372
    %v374 = vpop.f32.mrb[0].mxu0
    %v375 = vpop.f32.mrb[0].mxu0
    %v376 = vadd.f32 %v287, %v375
    %v377 = vpop.f32.mrb[0].mxu0
    %378 = vmatprep.mubr.bf16.mxu0 0
    %379 = vmatmul.mubr.bf16.gmra.mrb[0].mxu0 %v330
    %v380 = vpop.f32.mrb[0].mxu0
    %v381 = vadd.f32 %v292, %v380
    %v382 = vpop.f32.mrb[0].mxu0
    %v383 = vpop.f32.mrb[0].mxu0
    %v384 = vadd.f32 %v295, %v383
    %v385 = vpop.f32.mrb[0].mxu0
    %386 = vmatprep.mubr.bf16.mxu0 0
    %387 = vmatmul.mubr.bf16.gmra.mrb[0].mxu0 %v333
    %v388 = vpop.f32.mrb[0].mxu0
    %v389 = vadd.f32 %v300, %v388
    %v390 = vpop.f32.mrb[0].mxu0
    %v391 = vpop.f32.mrb[0].mxu0
    %v392 = vadd.f32 %v303, %v391
    %v393 = vpop.f32.mrb[0].mxu0
    %394 = vmatprep.mubr.bf16.mxu0 0
    %395 = vmatmul.mubr.bf16.gmra.mrb[0].mxu0 %v336
    %v396 = vpop.f32.mrb[0].mxu0
    %v397 = vadd.f32 %v308, %v396
    %v398 = vpop.f32.mrb[0].mxu0
    %v399 = vpop.f32.mrb[0].mxu0
    %v400 = vadd.f32 %v311, %v399
    %v401 = vpop.f32.mrb[0].mxu0
    %402 = vdwg.mxu0
    %v403 = vpack.c.bf16 %v37, %v36
    %v404 = vpack.c.bf16 %v39, %v38
    %v405 = vpack.c.bf16 %v41, %v40
    %v406 = vpack.c.bf16 %v43, %v42
    %s407 = scalar_lea.vmem %s1, 32
    %v408 = vld [vmem:[%s407] sm:$0xf]
    %v409 = vld [vmem:[%s407 + $0x4] sm:$0xf]
    %v410 = vld [vmem:[%s407 + $0x8] sm:$0xf]
    %v411 = vld [vmem:[%s407 + $0xc] sm:$0xf]
    %v416 = vunpack.c.l.b16 %v408
    %v417 = vunpack.c.l.b16 %v409
    %v418 = vunpack.c.l.b16 %v410
    %v419 = vunpack.c.l.b16 %v411
    %v420 = vpack.c.b16 %v417, %v416
    %v421 = vpack.c.b16 %v419, %v418
    %v425 = vsel %vm236, %v403, 0
    %v428 = vsel %vm236, %v404, 0
    %v431 = vsel %vm236, %v405, 0
    %v434 = vsel %vm236, %v406, 0
    %436 = vmatprep.subr.bf16.mxu0 0
    %437 = vmatpush1.bf16.msra.mxu0 %v420
    %438 = vmatprep.subr.bf16.mxu0 0
    %439 = vmatpush1.bf16.msra.mxu0 %v421
    %440 = vmatprep.subr.bf16.mxu0 0
    %441 = vmatpush1.bf16.msra.mxu0 0
    %442 = vmatprep.subr.bf16.mxu0 0
    %443 = vmatpush1.bf16.msra.mxu0 0
    %444 = vmatprep.subr.bf16.mxu0 0
    %445 = vmatpush1.bf16.msra.mxu0 0
    %446 = vmatprep.subr.bf16.mxu0 0
    %447 = vmatpush1.bf16.msra.mxu0 0
    %448 = vmatprep.subr.bf16.mxu0 0
    %449 = vmatpush1.bf16.msra.mxu0 0
    %450 = vmatprep.subr.bf16.mxu0 0
    %451 = vmatpush1.bf16.msra.mxu0 0
    %452 = vmatprep.subr.bf16.mxu0 0
    %453 = vmatpush1.bf16.msra.mxu0 0
    %454 = vmatprep.subr.bf16.mxu0 0
    %455 = vmatpush1.bf16.msra.mxu0 0
    %456 = vmatprep.subr.bf16.mxu0 0
    %457 = vmatpush1.bf16.msra.mxu0 0
    %458 = vmatprep.subr.bf16.mxu0 0
    %459 = vmatpush1.bf16.msra.mxu0 0
    %460 = vmatprep.subr.bf16.mxu0 0
    %461 = vmatpush1.bf16.msra.mxu0 0
    %462 = vmatprep.subr.bf16.mxu0 0
    %463 = vmatpush1.bf16.msra.mxu0 0
    %464 = vmatprep.subr.bf16.mxu0 0
    %465 = vmatpush1.bf16.msra.mxu0 0
    %466 = vmatprep.subr.bf16.mxu0 0
    %467 = vmatpush1.bf16.msra.mxu0 0
    %468 = vmatprep.mubr.bf16.mxu0 0
    %469 = vmatmul.mubr.bf16.gmra.mrb[0].mxu0 %v425
    %v470 = vpop.f32.mrb[0].mxu0
    %v471 = vadd.f32 0.0, %v470
    %v472 = vpop.f32.mrb[0].mxu0
    %v473 = vpop.f32.mrb[0].mxu0
    %v474 = vadd.f32 0.0, %v473
    %v475 = vpop.f32.mrb[0].mxu0
    %476 = vmatprep.mubr.bf16.mxu0 0
    %477 = vmatmul.mubr.bf16.gmra.mrb[0].mxu0 %v428
    %v478 = vpop.f32.mrb[0].mxu0
    %v479 = vadd.f32 0.0, %v478
    %v480 = vpop.f32.mrb[0].mxu0
    %v481 = vpop.f32.mrb[0].mxu0
    %v482 = vadd.f32 0.0, %v481
    %v483 = vpop.f32.mrb[0].mxu0
    %484 = vmatprep.mubr.bf16.mxu0 0
    %485 = vmatmul.mubr.bf16.gmra.mrb[0].mxu0 %v431
    %v486 = vpop.f32.mrb[0].mxu0
    %v487 = vadd.f32 0.0, %v486
    %v488 = vpop.f32.mrb[0].mxu0
    %v489 = vpop.f32.mrb[0].mxu0
    %v490 = vadd.f32 0.0, %v489
    %v491 = vpop.f32.mrb[0].mxu0
    %492 = vmatprep.mubr.bf16.mxu0 0
    %493 = vmatmul.mubr.bf16.gmra.mrb[0].mxu0 %v434
    %v494 = vpop.f32.mrb[0].mxu0
    %v495 = vadd.f32 0.0, %v494
    %v496 = vpop.f32.mrb[0].mxu0
    %v497 = vpop.f32.mrb[0].mxu0
    %v498 = vadd.f32 0.0, %v497
    %v499 = vpop.f32.mrb[0].mxu0
    %500 = vdwg.mxu0
    %v501 = vadd.f32 %v373, %v471
    %v502 = vadd.f32 %v376, %v474
    %v503 = vadd.f32 %v381, %v479
    %v504 = vadd.f32 %v384, %v482
    %v505 = vadd.f32 %v389, %v487
    %v506 = vadd.f32 %v392, %v490
    %v507 = vadd.f32 %v397, %v495
    %v508 = vadd.f32 %v400, %v498
    %v509 = vrot.slane %v36, 1
    %v510 = vrot.slane %v37, 1
    %v511 = vrot.slane %v38, 1
    %v512 = vrot.slane %v39, 1
    %v513 = vrot.slane %v40, 1
    %v514 = vrot.slane %v41, 1
    %v515 = vrot.slane %v42, 1
    %v516 = vrot.slane %v43, 1
    %vm517 = vcmp.lt.s32.totalorder %v45, 7
    %v518 = vsel %vm517, %v515, %v516
    %v519 = vsel %vm517, %v514, %v515
    %v520 = vsel %vm517, %v513, %v514
    %v521 = vsel %vm517, %v512, %v513
    %v522 = vsel %vm517, %v511, %v512
    %v523 = vsel %vm517, %v510, %v511
    %v524 = vsel %vm517, %v509, %v510
    %v525 = vsel %vm517, %v516, %v509
    %v526 = vadd.s32 %v53, 1
    %v527 = vadd.s32 %v54, 1
    %v528 = vadd.s32 %v55, 1
    %v529 = vadd.s32 %v56, 1
    %v530 = vadd.s32 %v57, 1
    %v531 = vadd.s32 %v58, 1
    %v532 = vadd.s32 %v59, 1
    %v533 = vadd.s32 %v60, 1
    %vm534 = vcmp.ge.s32.totalorder %v526, 0
    %vm535 = vcmp.ge.s32.totalorder %v527, 0
    %vm536 = vcmp.ge.s32.totalorder %v528, 0
    %vm537 = vcmp.ge.s32.totalorder %v529, 0
    %vm538 = vcmp.ge.s32.totalorder %v530, 0
    %vm539 = vcmp.ge.s32.totalorder %v531, 0
    %vm540 = vcmp.ge.s32.totalorder %v532, 0
    %vm541 = vcmp.ge.s32.totalorder %v533, 0
    %vm542 = vcmp.lt.s32.totalorder %v526, 16
    %vm543 = vcmp.lt.s32.totalorder %v527, 16
    %vm544 = vcmp.lt.s32.totalorder %v528, 16
    %vm545 = vcmp.lt.s32.totalorder %v529, 16
    %vm546 = vcmp.lt.s32.totalorder %v530, 16
    %vm547 = vcmp.lt.s32.totalorder %v531, 16
    %vm548 = vcmp.lt.s32.totalorder %v532, 16
    %vm549 = vcmp.lt.s32.totalorder %v533, 16
    %vm550 = vmand %vm534, %vm542
    %vm551 = vmand %vm535, %vm543
    %vm552 = vmand %vm536, %vm544
    %vm553 = vmand %vm537, %vm545
    %vm554 = vmand %vm538, %vm546
    %vm555 = vmand %vm539, %vm547
    %vm556 = vmand %vm540, %vm548
    %vm557 = vmand %vm541, %vm549
    %v558 = vsel %vm550, 1, 0
    %v559 = vsel %vm551, 1, 0
    %v560 = vsel %vm552, 1, 0
    %v561 = vsel %vm553, 1, 0
    %v562 = vsel %vm554, 1, 0
    %v563 = vsel %vm555, 1, 0
    %v564 = vsel %vm556, 1, 0
    %v565 = vsel %vm557, 1, 0
    %vm566 = vcmp.eq.s32.totalorder %v558, 1
    %vm567 = vcmp.eq.s32.totalorder %v559, 1
    %vm568 = vcmp.eq.s32.totalorder %v560, 1
    %vm569 = vcmp.eq.s32.totalorder %v561, 1
    %vm570 = vcmp.eq.s32.totalorder %v562, 1
    %vm571 = vcmp.eq.s32.totalorder %v563, 1
    %vm572 = vcmp.eq.s32.totalorder %v564, 1
    %vm573 = vcmp.eq.s32.totalorder %v565, 1
    %v574 = vsel %vm566, %v524, 0.0
    %v575 = vsel %vm567, %v523, 0.0
    %v576 = vsel %vm568, %v522, 0.0
    %v577 = vsel %vm569, %v521, 0.0
    %v578 = vsel %vm570, %v520, 0.0
    %v579 = vsel %vm571, %v519, 0.0
    %v580 = vsel %vm572, %v518, 0.0
    %v581 = vsel %vm573, %v525, 0.0
    %v582 = vpack.c.bf16 %v575, %v574
    %v583 = vpack.c.bf16 %v577, %v576
    %v584 = vpack.c.bf16 %v579, %v578
    %v585 = vpack.c.bf16 %v581, %v580
    %s586 = scalar_lea.vmem %s1, 48
    %v587 = vld [vmem:[%s586] sm:$0xf]
    %v588 = vld [vmem:[%s586 + $0x4] sm:$0xf]
    %v589 = vld [vmem:[%s586 + $0x8] sm:$0xf]
    %v590 = vld [vmem:[%s586 + $0xc] sm:$0xf]
    %v595 = vunpack.c.l.b16 %v587
    %v596 = vunpack.c.l.b16 %v588
    %v597 = vunpack.c.l.b16 %v589
    %v598 = vunpack.c.l.b16 %v590
    %v599 = vpack.c.b16 %v596, %v595
    %v600 = vpack.c.b16 %v598, %v597
    %v604 = vsel %vm236, %v582, 0
    %v607 = vsel %vm236, %v583, 0
    %v610 = vsel %vm236, %v584, 0
    %v613 = vsel %vm236, %v585, 0
    %615 = vmatprep.subr.bf16.mxu0 0
    %616 = vmatpush1.bf16.msra.mxu0 %v599
    %617 = vmatprep.subr.bf16.mxu0 0
    %618 = vmatpush1.bf16.msra.mxu0 %v600
    %619 = vmatprep.subr.bf16.mxu0 0
    %620 = vmatpush1.bf16.msra.mxu0 0
    %621 = vmatprep.subr.bf16.mxu0 0
    %622 = vmatpush1.bf16.msra.mxu0 0
    %623 = vmatprep.subr.bf16.mxu0 0
    %624 = vmatpush1.bf16.msra.mxu0 0
    %625 = vmatprep.subr.bf16.mxu0 0
    %626 = vmatpush1.bf16.msra.mxu0 0
    %627 = vmatprep.subr.bf16.mxu0 0
    %628 = vmatpush1.bf16.msra.mxu0 0
    %629 = vmatprep.subr.bf16.mxu0 0
    %630 = vmatpush1.bf16.msra.mxu0 0
    %631 = vmatprep.subr.bf16.mxu0 0
    %632 = vmatpush1.bf16.msra.mxu0 0
    %633 = vmatprep.subr.bf16.mxu0 0
    %634 = vmatpush1.bf16.msra.mxu0 0
    %635 = vmatprep.subr.bf16.mxu0 0
    %636 = vmatpush1.bf16.msra.mxu0 0
    %637 = vmatprep.subr.bf16.mxu0 0
    %638 = vmatpush1.bf16.msra.mxu0 0
    %639 = vmatprep.subr.bf16.mxu0 0
    %640 = vmatpush1.bf16.msra.mxu0 0
    %641 = vmatprep.subr.bf16.mxu0 0
    %642 = vmatpush1.bf16.msra.mxu0 0
    %643 = vmatprep.subr.bf16.mxu0 0
    %644 = vmatpush1.bf16.msra.mxu0 0
    %645 = vmatprep.subr.bf16.mxu0 0
    %646 = vmatpush1.bf16.msra.mxu0 0
    %647 = vmatprep.mubr.bf16.mxu0 0
    %648 = vmatmul.mubr.bf16.gmra.mrb[0].mxu0 %v604
    %v649 = vpop.f32.mrb[0].mxu0
    %v650 = vadd.f32 0.0, %v649
    %v651 = vpop.f32.mrb[0].mxu0
    %v652 = vpop.f32.mrb[0].mxu0
    %v653 = vadd.f32 0.0, %v652
    %v654 = vpop.f32.mrb[0].mxu0
    %655 = vmatprep.mubr.bf16.mxu0 0
    %656 = vmatmul.mubr.bf16.gmra.mrb[0].mxu0 %v607
    %v657 = vpop.f32.mrb[0].mxu0
    %v658 = vadd.f32 0.0, %v657
    %v659 = vpop.f32.mrb[0].mxu0
    %v660 = vpop.f32.mrb[0].mxu0
    %v661 = vadd.f32 0.0, %v660
    %v662 = vpop.f32.mrb[0].mxu0
    %663 = vmatprep.mubr.bf16.mxu0 0
    %664 = vmatmul.mubr.bf16.gmra.mrb[0].mxu0 %v610
    %v665 = vpop.f32.mrb[0].mxu0
    %v666 = vadd.f32 0.0, %v665
    %v667 = vpop.f32.mrb[0].mxu0
    %v668 = vpop.f32.mrb[0].mxu0
    %v669 = vadd.f32 0.0, %v668
    %v670 = vpop.f32.mrb[0].mxu0
    %671 = vmatprep.mubr.bf16.mxu0 0
    %672 = vmatmul.mubr.bf16.gmra.mrb[0].mxu0 %v613
    %v673 = vpop.f32.mrb[0].mxu0
    %v674 = vadd.f32 0.0, %v673
    %v675 = vpop.f32.mrb[0].mxu0
    %v676 = vpop.f32.mrb[0].mxu0
    %v677 = vadd.f32 0.0, %v676
    %v678 = vpop.f32.mrb[0].mxu0
    %679 = vdwg.mxu0
    %v680 = vadd.f32 %v501, %v650
    %v681 = vadd.f32 %v502, %v653
    %v682 = vadd.f32 %v503, %v658
    %v683 = vadd.f32 %v504, %v661
    %v684 = vadd.f32 %v505, %v666
    %v685 = vadd.f32 %v506, %v669
    %v686 = vadd.f32 %v507, %v674
    %v687 = vadd.f32 %v508, %v677
    %v688 = vrot.slane %v36, 2
    %v689 = vrot.slane %v37, 2
    %v690 = vrot.slane %v38, 2
    %v691 = vrot.slane %v39, 2
    %v692 = vrot.slane %v40, 2
    %v693 = vrot.slane %v41, 2
    %v694 = vrot.slane %v42, 2
    %v695 = vrot.slane %v43, 2
    %vm696 = vcmp.lt.s32.totalorder %v45, 6
    %v697 = vsel %vm696, %v694, %v695
    %v698 = vsel %vm696, %v693, %v694
    %v699 = vsel %vm696, %v692, %v693
    %v700 = vsel %vm696, %v691, %v692
    %v701 = vsel %vm696, %v690, %v691
    %v702 = vsel %vm696, %v689, %v690
    %v703 = vsel %vm696, %v688, %v689
    %v704 = vsel %vm696, %v695, %v688
    %v705 = vadd.s32 %v53, 2
    %v706 = vadd.s32 %v54, 2
    %v707 = vadd.s32 %v55, 2
    %v708 = vadd.s32 %v56, 2
    %v709 = vadd.s32 %v57, 2
    %v710 = vadd.s32 %v58, 2
    %v711 = vadd.s32 %v59, 2
    %v712 = vadd.s32 %v60, 2
    %vm713 = vcmp.ge.s32.totalorder %v705, 0
    %vm714 = vcmp.ge.s32.totalorder %v706, 0
    %vm715 = vcmp.ge.s32.totalorder %v707, 0
    %vm716 = vcmp.ge.s32.totalorder %v708, 0
    %vm717 = vcmp.ge.s32.totalorder %v709, 0
    %vm718 = vcmp.ge.s32.totalorder %v710, 0
    %vm719 = vcmp.ge.s32.totalorder %v711, 0
    %vm720 = vcmp.ge.s32.totalorder %v712, 0
    %vm721 = vcmp.lt.s32.totalorder %v705, 16
    %vm722 = vcmp.lt.s32.totalorder %v706, 16
    %vm723 = vcmp.lt.s32.totalorder %v707, 16
    %vm724 = vcmp.lt.s32.totalorder %v708, 16
    %vm725 = vcmp.lt.s32.totalorder %v709, 16
    %vm726 = vcmp.lt.s32.totalorder %v710, 16
    %vm727 = vcmp.lt.s32.totalorder %v711, 16
    %vm728 = vcmp.lt.s32.totalorder %v712, 16
    %vm729 = vmand %vm713, %vm721
    %vm730 = vmand %vm714, %vm722
    %vm731 = vmand %vm715, %vm723
    %vm732 = vmand %vm716, %vm724
    %vm733 = vmand %vm717, %vm725
    %vm734 = vmand %vm718, %vm726
    %vm735 = vmand %vm719, %vm727
    %vm736 = vmand %vm720, %vm728
    %v737 = vsel %vm729, 1, 0
    %v738 = vsel %vm730, 1, 0
    %v739 = vsel %vm731, 1, 0
    %v740 = vsel %vm732, 1, 0
    %v741 = vsel %vm733, 1, 0
    %v742 = vsel %vm734, 1, 0
    %v743 = vsel %vm735, 1, 0
    %v744 = vsel %vm736, 1, 0
    %vm745 = vcmp.eq.s32.totalorder %v737, 1
    %vm746 = vcmp.eq.s32.totalorder %v738, 1
    %vm747 = vcmp.eq.s32.totalorder %v739, 1
    %vm748 = vcmp.eq.s32.totalorder %v740, 1
    %vm749 = vcmp.eq.s32.totalorder %v741, 1
    %vm750 = vcmp.eq.s32.totalorder %v742, 1
    %vm751 = vcmp.eq.s32.totalorder %v743, 1
    %vm752 = vcmp.eq.s32.totalorder %v744, 1
    %v753 = vsel %vm745, %v703, 0.0
    %v754 = vsel %vm746, %v702, 0.0
    %v755 = vsel %vm747, %v701, 0.0
    %v756 = vsel %vm748, %v700, 0.0
    %v757 = vsel %vm749, %v699, 0.0
    %v758 = vsel %vm750, %v698, 0.0
    %v759 = vsel %vm751, %v697, 0.0
    %v760 = vsel %vm752, %v704, 0.0
    %v761 = vpack.c.bf16 %v754, %v753
    %v762 = vpack.c.bf16 %v756, %v755
    %v763 = vpack.c.bf16 %v758, %v757
    %v764 = vpack.c.bf16 %v760, %v759
    %s765 = scalar_lea.vmem %s1, 64
    %v766 = vld [vmem:[%s765] sm:$0xf]
    %v767 = vld [vmem:[%s765 + $0x4] sm:$0xf]
    %v768 = vld [vmem:[%s765 + $0x8] sm:$0xf]
    %v769 = vld [vmem:[%s765 + $0xc] sm:$0xf]
    %v774 = vunpack.c.l.b16 %v766
    %v775 = vunpack.c.l.b16 %v767
    %v776 = vunpack.c.l.b16 %v768
    %v777 = vunpack.c.l.b16 %v769
    %v778 = vpack.c.b16 %v775, %v774
    %v779 = vpack.c.b16 %v777, %v776
    %v783 = vsel %vm236, %v761, 0
    %v786 = vsel %vm236, %v762, 0
    %v789 = vsel %vm236, %v763, 0
    %v792 = vsel %vm236, %v764, 0
    %794 = vmatprep.subr.bf16.mxu0 0
    %795 = vmatpush1.bf16.msra.mxu0 %v778
    %796 = vmatprep.subr.bf16.mxu0 0
    %797 = vmatpush1.bf16.msra.mxu0 %v779
    %798 = vmatprep.subr.bf16.mxu0 0
    %799 = vmatpush1.bf16.msra.mxu0 0
    %800 = vmatprep.subr.bf16.mxu0 0
    %801 = vmatpush1.bf16.msra.mxu0 0
    %802 = vmatprep.subr.bf16.mxu0 0
    %803 = vmatpush1.bf16.msra.mxu0 0
    %804 = vmatprep.subr.bf16.mxu0 0
    %805 = vmatpush1.bf16.msra.mxu0 0
    %806 = vmatprep.subr.bf16.mxu0 0
    %807 = vmatpush1.bf16.msra.mxu0 0
    %808 = vmatprep.subr.bf16.mxu0 0
    %809 = vmatpush1.bf16.msra.mxu0 0
    %810 = vmatprep.subr.bf16.mxu0 0
    %811 = vmatpush1.bf16.msra.mxu0 0
    %812 = vmatprep.subr.bf16.mxu0 0
    %813 = vmatpush1.bf16.msra.mxu0 0
    %814 = vmatprep.subr.bf16.mxu0 0
    %815 = vmatpush1.bf16.msra.mxu0 0
    %816 = vmatprep.subr.bf16.mxu0 0
    %817 = vmatpush1.bf16.msra.mxu0 0
    %818 = vmatprep.subr.bf16.mxu0 0
    %819 = vmatpush1.bf16.msra.mxu0 0
    %820 = vmatprep.subr.bf16.mxu0 0
    %821 = vmatpush1.bf16.msra.mxu0 0
    %822 = vmatprep.subr.bf16.mxu0 0
    %823 = vmatpush1.bf16.msra.mxu0 0
    %824 = vmatprep.subr.bf16.mxu0 0
    %825 = vmatpush1.bf16.msra.mxu0 0
    %826 = vmatprep.mubr.bf16.mxu0 0
    %827 = vmatmul.mubr.bf16.gmra.mrb[0].mxu0 %v783
    %v828 = vpop.f32.mrb[0].mxu0
    %v829 = vadd.f32 0.0, %v828
    %v830 = vpop.f32.mrb[0].mxu0
    %v831 = vpop.f32.mrb[0].mxu0
    %v832 = vadd.f32 0.0, %v831
    %v833 = vpop.f32.mrb[0].mxu0
    %834 = vmatprep.mubr.bf16.mxu0 0
    %835 = vmatmul.mubr.bf16.gmra.mrb[0].mxu0 %v786
    %v836 = vpop.f32.mrb[0].mxu0
    %v837 = vadd.f32 0.0, %v836
    %v838 = vpop.f32.mrb[0].mxu0
    %v839 = vpop.f32.mrb[0].mxu0
    %v840 = vadd.f32 0.0, %v839
    %v841 = vpop.f32.mrb[0].mxu0
    %842 = vmatprep.mubr.bf16.mxu0 0
    %843 = vmatmul.mubr.bf16.gmra.mrb[0].mxu0 %v789
    %v844 = vpop.f32.mrb[0].mxu0
    %v845 = vadd.f32 0.0, %v844
    %v846 = vpop.f32.mrb[0].mxu0
    %v847 = vpop.f32.mrb[0].mxu0
    %v848 = vadd.f32 0.0, %v847
    %v849 = vpop.f32.mrb[0].mxu0
    %850 = vmatprep.mubr.bf16.mxu0 0
    %851 = vmatmul.mubr.bf16.gmra.mrb[0].mxu0 %v792
    %v852 = vpop.f32.mrb[0].mxu0
    %v853 = vadd.f32 0.0, %v852
    %v854 = vpop.f32.mrb[0].mxu0
    %v855 = vpop.f32.mrb[0].mxu0
    %v856 = vadd.f32 0.0, %v855
    %v857 = vpop.f32.mrb[0].mxu0
    %858 = vdwg.mxu0
    %v859 = vadd.f32 %v680, %v829
    %v860 = vadd.f32 %v681, %v832
    %v861 = vadd.f32 %v682, %v837
    %v862 = vadd.f32 %v683, %v840
    %v863 = vadd.f32 %v684, %v845
    %v864 = vadd.f32 %v685, %v848
    %v865 = vadd.f32 %v686, %v853
    %v866 = vadd.f32 %v687, %v856
    %v867 = vld [vmem:[%s2] sm:$0x1]
    %v869 = vlaneseq
    %v870 = vshrl.u32 %v869, 7
    %v871 = vsub.s32 0, %v870
    %v872 = vrot.slane %v867, %v871
    %v874 = vadd.f32 %v859, %v872
    %v875 = vadd.f32 %v860, %v872
    %v876 = vadd.f32 %v861, %v872
    %v877 = vadd.f32 %v862, %v872
    %v878 = vadd.f32 %v863, %v872
    %v879 = vadd.f32 %v864, %v872
    %v880 = vadd.f32 %v865, %v872
    %v881 = vadd.f32 %v866, %v872
    %v882 = vmax.f32 %v874, 0.0
    %v883 = vmax.f32 %v875, 0.0
    %v884 = vmax.f32 %v876, 0.0
    %v885 = vmax.f32 %v877, 0.0
    %v886 = vmax.f32 %v878, 0.0
    %v887 = vmax.f32 %v879, 0.0
    %v888 = vmax.f32 %v880, 0.0
    %v889 = vmax.f32 %v881, 0.0
    %v890 = vld [vmem:[%s4] sm:$0x1]
    %v891 = vsel %vm236, %v882, -inf
    %v892 = vsel %vm236, %v883, -inf
    %v893 = vmax.f32 %v891, %v892
    %v894 = vrot.slane %v893, 4
    %v895 = vmax.f32 %v893, %v894
    %v896 = vrot.slane %v895, 2
    %v897 = vmax.f32 %v895, %v896
    %v898 = vrot.slane %v897, 1
    %v899 = vmax.f32 %v897, %v898
    %v900 = vpack.c.bf16 %v899, %v899
    %v901 = vld [vmem:[#allocation2] sm:$0xf]
    %v902 = vld [vmem:[#allocation2 + $0x4] sm:$0xf]
    %v903 = vld [vmem:[#allocation2 + $0x8] sm:$0xf]
    %v904 = vld [vmem:[#allocation2 + $0xc] sm:$0xf]
    %v909 = vunpack.c.l.b16 %v901
    %v910 = vunpack.c.l.b16 %v902
    %v911 = vunpack.c.l.b16 %v903
    %v912 = vunpack.c.l.b16 %v904
    %v913 = vpack.c.b16 %v910, %v909
    %v914 = vpack.c.b16 %v912, %v911
    %v918 = vsel %vm236, %v900, 0
    %920 = vmatprep.subr.bf16.mxu0 0
    %921 = vmatpush1.bf16.msra.mxu0 %v913
    %922 = vmatprep.subr.bf16.mxu0 0
    %923 = vmatpush1.bf16.msra.mxu0 %v914
    %924 = vmatprep.subr.bf16.mxu0 0
    %925 = vmatpush1.bf16.msra.mxu0 0
    %926 = vmatprep.subr.bf16.mxu0 0
    %927 = vmatpush1.bf16.msra.mxu0 0
    %928 = vmatprep.subr.bf16.mxu0 0
    %929 = vmatpush1.bf16.msra.mxu0 0
    %930 = vmatprep.subr.bf16.mxu0 0
    %931 = vmatpush1.bf16.msra.mxu0 0
    %932 = vmatprep.subr.bf16.mxu0 0
    %933 = vmatpush1.bf16.msra.mxu0 0
    %934 = vmatprep.subr.bf16.mxu0 0
    %935 = vmatpush1.bf16.msra.mxu0 0
    %936 = vmatprep.subr.bf16.mxu0 0
    %937 = vmatpush1.bf16.msra.mxu0 0
    %938 = vmatprep.subr.bf16.mxu0 0
    %939 = vmatpush1.bf16.msra.mxu0 0
    %940 = vmatprep.subr.bf16.mxu0 0
    %941 = vmatpush1.bf16.msra.mxu0 0
    %942 = vmatprep.subr.bf16.mxu0 0
    %943 = vmatpush1.bf16.msra.mxu0 0
    %944 = vmatprep.subr.bf16.mxu0 0
    %945 = vmatpush1.bf16.msra.mxu0 0
    %946 = vmatprep.subr.bf16.mxu0 0
    %947 = vmatpush1.bf16.msra.mxu0 0
    %948 = vmatprep.subr.bf16.mxu0 0
    %949 = vmatpush1.bf16.msra.mxu0 0
    %950 = vmatprep.subr.bf16.mxu0 0
    %951 = vmatpush1.bf16.msra.mxu0 0
    %952 = vmatprep.mubr.bf16.mxu0 0
    %953 = vmatmul.mubr.bf16.gmra.mrb[0].mxu0 %v918
    %v954 = vpop.f32.mrb[0].mxu0
    %v955 = vadd.f32 0.0, %v954
    %v956 = vpop.f32.mrb[0].mxu0
    %v957 = vpop.f32.mrb[0].mxu0
    %v958 = vpop.f32.mrb[0].mxu0
    %959 = vdwg.mxu0
    %v960 = vadd.f32 %v890, %v955
    %v961 = vsel %vm236, %v884, -inf
    %v962 = vsel %vm236, %v885, -inf
    %v963 = vmax.f32 %v961, %v962
    %v964 = vrot.slane %v963, 4
    %v965 = vmax.f32 %v963, %v964
    %v966 = vrot.slane %v965, 2
    %v967 = vmax.f32 %v965, %v966
    %v968 = vrot.slane %v967, 1
    %v969 = vmax.f32 %v967, %v968
    %v970 = vpack.c.bf16 %v969, %v969
    %s971 = scalar_lea.vmem [#allocation2], 16
    %v972 = vld [vmem:[%s971] sm:$0xf]
    %v973 = vld [vmem:[%s971 + $0x4] sm:$0xf]
    %v974 = vld [vmem:[%s971 + $0x8] sm:$0xf]
    %v975 = vld [vmem:[%s971 + $0xc] sm:$0xf]
    %v980 = vunpack.c.l.b16 %v972
    %v981 = vunpack.c.l.b16 %v973
    %v982 = vunpack.c.l.b16 %v974
    %v983 = vunpack.c.l.b16 %v975
    %v984 = vpack.c.b16 %v981, %v980
    %v985 = vpack.c.b16 %v983, %v982
    %v989 = vsel %vm236, %v970, 0
    %991 = vmatprep.subr.bf16.mxu0 0
    %992 = vmatpush1.bf16.msra.mxu0 %v984
    %993 = vmatprep.subr.bf16.mxu0 0
    %994 = vmatpush1.bf16.msra.mxu0 %v985
    %995 = vmatprep.subr.bf16.mxu0 0
    %996 = vmatpush1.bf16.msra.mxu0 0
    %997 = vmatprep.subr.bf16.mxu0 0
    %998 = vmatpush1.bf16.msra.mxu0 0
    %999 = vmatprep.subr.bf16.mxu0 0
    %1000 = vmatpush1.bf16.msra.mxu0 0
    %1001 = vmatprep.subr.bf16.mxu0 0
    %1002 = vmatpush1.bf16.msra.mxu0 0
    %1003 = vmatprep.subr.bf16.mxu0 0
    %1004 = vmatpush1.bf16.msra.mxu0 0
    %1005 = vmatprep.subr.bf16.mxu0 0
    %1006 = vmatpush1.bf16.msra.mxu0 0
    %1007 = vmatprep.subr.bf16.mxu0 0
    %1008 = vmatpush1.bf16.msra.mxu0 0
    %1009 = vmatprep.subr.bf16.mxu0 0
    %1010 = vmatpush1.bf16.msra.mxu0 0
    %1011 = vmatprep.subr.bf16.mxu0 0
    %1012 = vmatpush1.bf16.msra.mxu0 0
    %1013 = vmatprep.subr.bf16.mxu0 0
    %1014 = vmatpush1.bf16.msra.mxu0 0
    %1015 = vmatprep.subr.bf16.mxu0 0
    %1016 = vmatpush1.bf16.msra.mxu0 0
    %1017 = vmatprep.subr.bf16.mxu0 0
    %1018 = vmatpush1.bf16.msra.mxu0 0
    %1019 = vmatprep.subr.bf16.mxu0 0
    %1020 = vmatpush1.bf16.msra.mxu0 0
    %1021 = vmatprep.subr.bf16.mxu0 0
    %1022 = vmatpush1.bf16.msra.mxu0 0
    %1023 = vmatprep.mubr.bf16.mxu0 0
    %1024 = vmatmul.mubr.bf16.gmra.mrb[0].mxu0 %v989
    %v1025 = vpop.f32.mrb[0].mxu0
    %v1026 = vadd.f32 0.0, %v1025
    %v1027 = vpop.f32.mrb[0].mxu0
    %v1028 = vpop.f32.mrb[0].mxu0
    %v1029 = vpop.f32.mrb[0].mxu0
    %1030 = vdwg.mxu0
    %v1031 = vadd.f32 %v960, %v1026
    %v1032 = vsel %vm236, %v886, -inf
    %v1033 = vsel %vm236, %v887, -inf
    %v1034 = vmax.f32 %v1032, %v1033
    %v1035 = vrot.slane %v1034, 4
    %v1036 = vmax.f32 %v1034, %v1035
    %v1037 = vrot.slane %v1036, 2
    %v1038 = vmax.f32 %v1036, %v1037
    %v1039 = vrot.slane %v1038, 1
    %v1040 = vmax.f32 %v1038, %v1039
    %v1041 = vpack.c.bf16 %v1040, %v1040
    %s1042 = scalar_lea.vmem [#allocation2], 32
    %v1043 = vld [vmem:[%s1042] sm:$0xf]
    %v1044 = vld [vmem:[%s1042 + $0x4] sm:$0xf]
    %v1045 = vld [vmem:[%s1042 + $0x8] sm:$0xf]
    %v1046 = vld [vmem:[%s1042 + $0xc] sm:$0xf]
    %v1051 = vunpack.c.l.b16 %v1043
    %v1052 = vunpack.c.l.b16 %v1044
    %v1053 = vunpack.c.l.b16 %v1045
    %v1054 = vunpack.c.l.b16 %v1046
    %v1055 = vpack.c.b16 %v1052, %v1051
    %v1056 = vpack.c.b16 %v1054, %v1053
    %v1060 = vsel %vm236, %v1041, 0
    %1062 = vmatprep.subr.bf16.mxu0 0
    %1063 = vmatpush1.bf16.msra.mxu0 %v1055
    %1064 = vmatprep.subr.bf16.mxu0 0
    %1065 = vmatpush1.bf16.msra.mxu0 %v1056
    %1066 = vmatprep.subr.bf16.mxu0 0
    %1067 = vmatpush1.bf16.msra.mxu0 0
    %1068 = vmatprep.subr.bf16.mxu0 0
    %1069 = vmatpush1.bf16.msra.mxu0 0
    %1070 = vmatprep.subr.bf16.mxu0 0
    %1071 = vmatpush1.bf16.msra.mxu0 0
    %1072 = vmatprep.subr.bf16.mxu0 0
    %1073 = vmatpush1.bf16.msra.mxu0 0
    %1074 = vmatprep.subr.bf16.mxu0 0
    %1075 = vmatpush1.bf16.msra.mxu0 0
    %1076 = vmatprep.subr.bf16.mxu0 0
    %1077 = vmatpush1.bf16.msra.mxu0 0
    %1078 = vmatprep.subr.bf16.mxu0 0
    %1079 = vmatpush1.bf16.msra.mxu0 0
    %1080 = vmatprep.subr.bf16.mxu0 0
    %1081 = vmatpush1.bf16.msra.mxu0 0
    %1082 = vmatprep.subr.bf16.mxu0 0
    %1083 = vmatpush1.bf16.msra.mxu0 0
    %1084 = vmatprep.subr.bf16.mxu0 0
    %1085 = vmatpush1.bf16.msra.mxu0 0
    %1086 = vmatprep.subr.bf16.mxu0 0
    %1087 = vmatpush1.bf16.msra.mxu0 0
    %1088 = vmatprep.subr.bf16.mxu0 0
    %1089 = vmatpush1.bf16.msra.mxu0 0
    %1090 = vmatprep.subr.bf16.mxu0 0
    %1091 = vmatpush1.bf16.msra.mxu0 0
    %1092 = vmatprep.subr.bf16.mxu0 0
    %1093 = vmatpush1.bf16.msra.mxu0 0
    %1094 = vmatprep.mubr.bf16.mxu0 0
    %1095 = vmatmul.mubr.bf16.gmra.mrb[0].mxu0 %v1060
    %v1096 = vpop.f32.mrb[0].mxu0
    %v1097 = vadd.f32 0.0, %v1096
    %v1098 = vpop.f32.mrb[0].mxu0
    %v1099 = vpop.f32.mrb[0].mxu0
    %v1100 = vpop.f32.mrb[0].mxu0
    %1101 = vdwg.mxu0
    %v1102 = vadd.f32 %v1031, %v1097
    %v1103 = vsel %vm236, %v888, -inf
    %v1104 = vsel %vm236, %v889, -inf
    %v1105 = vmax.f32 %v1103, %v1104
    %v1106 = vrot.slane %v1105, 4
    %v1107 = vmax.f32 %v1105, %v1106
    %v1108 = vrot.slane %v1107, 2
    %v1109 = vmax.f32 %v1107, %v1108
    %v1110 = vrot.slane %v1109, 1
    %v1111 = vmax.f32 %v1109, %v1110
    %v1112 = vpack.c.bf16 %v1111, %v1111
    %s1113 = scalar_lea.vmem [#allocation2], 48
    %v1114 = vld [vmem:[%s1113] sm:$0xf]
    %v1115 = vld [vmem:[%s1113 + $0x4] sm:$0xf]
    %v1116 = vld [vmem:[%s1113 + $0x8] sm:$0xf]
    %v1117 = vld [vmem:[%s1113 + $0xc] sm:$0xf]
    %v1122 = vunpack.c.l.b16 %v1114
    %v1123 = vunpack.c.l.b16 %v1115
    %v1124 = vunpack.c.l.b16 %v1116
    %v1125 = vunpack.c.l.b16 %v1117
    %v1126 = vpack.c.b16 %v1123, %v1122
    %v1127 = vpack.c.b16 %v1125, %v1124
    %v1131 = vsel %vm236, %v1112, 0
    %1133 = vmatprep.subr.bf16.mxu0 0
    %1134 = vmatpush1.bf16.msra.mxu0 %v1126
    %1135 = vmatprep.subr.bf16.mxu0 0
    %1136 = vmatpush1.bf16.msra.mxu0 %v1127
    %1137 = vmatprep.subr.bf16.mxu0 0
    %1138 = vmatpush1.bf16.msra.mxu0 0
    %1139 = vmatprep.subr.bf16.mxu0 0
    %1140 = vmatpush1.bf16.msra.mxu0 0
    %1141 = vmatprep.subr.bf16.mxu0 0
    %1142 = vmatpush1.bf16.msra.mxu0 0
    %1143 = vmatprep.subr.bf16.mxu0 0
    %1144 = vmatpush1.bf16.msra.mxu0 0
    %1145 = vmatprep.subr.bf16.mxu0 0
    %1146 = vmatpush1.bf16.msra.mxu0 0
    %1147 = vmatprep.subr.bf16.mxu0 0
    %1148 = vmatpush1.bf16.msra.mxu0 0
    %1149 = vmatprep.subr.bf16.mxu0 0
    %1150 = vmatpush1.bf16.msra.mxu0 0
    %1151 = vmatprep.subr.bf16.mxu0 0
    %1152 = vmatpush1.bf16.msra.mxu0 0
    %1153 = vmatprep.subr.bf16.mxu0 0
    %1154 = vmatpush1.bf16.msra.mxu0 0
    %1155 = vmatprep.subr.bf16.mxu0 0
    %1156 = vmatpush1.bf16.msra.mxu0 0
    %1157 = vmatprep.subr.bf16.mxu0 0
    %1158 = vmatpush1.bf16.msra.mxu0 0
    %1159 = vmatprep.subr.bf16.mxu0 0
    %1160 = vmatpush1.bf16.msra.mxu0 0
    %1161 = vmatprep.subr.bf16.mxu0 0
    %1162 = vmatpush1.bf16.msra.mxu0 0
    %1163 = vmatprep.subr.bf16.mxu0 0
    %1164 = vmatpush1.bf16.msra.mxu0 0
    %1165 = vmatprep.mubr.bf16.mxu0 0
    %1166 = vmatmul.mubr.bf16.gmra.mrb[0].mxu0 %v1131
    %v1167 = vpop.f32.mrb[0].mxu0
    %v1168 = vadd.f32 0.0, %v1167
    %v1169 = vpop.f32.mrb[0].mxu0
    %v1170 = vpop.f32.mrb[0].mxu0
    %v1171 = vpop.f32.mrb[0].mxu0
    %1172 = vdwg.mxu0
    %v1173 = vadd.f32 %v1102, %v1168
    %1174 = vst [vmem:[#allocation5] sm:$0x1] %v1173
    // Predicated region
    $region26: #{tpu_custom_call.1} parent=1 // pred_check
      _
    $region27: #{tpu_custom_call.1} parent=1 // pred_check_branch
      %1176 = sbr.rel (0) target = $region29
    $region28: #{tpu_custom_call.1} parent=1 // pred_region
      %s1178 = ssub.s32 16, 16
      %1179 = vsyncadd [#allocation4], %s1178
      %s1181 = sshll.u32 [#allocation5], 4
      %s1182 = int_to_ptr.vmem [resolvable:$true] %s1181
      %1184 = dma.vmem_to_hbm [thread:$0]  %s1182, 16, %s5, [#allocation4]
    $region29: #{tpu_custom_call.1} parent=1 // pred_fallthru
      _
    // Predicated region
    $region30: #{tpu_custom_call.1} parent=1 // pred_check
      _
    $region31: #{tpu_custom_call.1} parent=1 // pred_check_branch
      %1186 = sbr.rel (0) target = $region33
    $region32: #{tpu_custom_call.1} parent=1 // pred_region
      %1187 = dma.done [#allocation4], 16
    $region33: #{tpu_custom_call.1} parent=1 // pred_fallthru
      _
    %1188 = vsyncpa [#allocation3], 1
    %1189 = vsyncpa [#allocation4], 1

</llo_original>
